<compile_context>
chip_gen: v7x
topology: tpu7x:2x2x1
jax: 0.10.0
libtpu: 0.0.40
codegen_flags: <defaults>
</compile_context>

<pallas_src>
import math
import functools

import numpy as np
import jax
import jax.numpy as jnp
from jax import lax
from jax.experimental import pallas as pl
from jax.experimental.pallas import tpu as pltpu


def _pick_tile(n, cap):
    """Largest divisor of n that is <= cap and a multiple of 8 (else n)."""
    for d in range(min(n, cap), 0, -1):
        if n % d == 0 and d % 8 == 0:
            return d
    return n


# --------------------- kernel 1: sampled sparsity measure ---------------------
def _prob_measure_kernel(q_ref, k_ref, cnt_ref, m_ref, *, inv_lk):
    # q: (tq, E) bf16   k: (L_K, E) bf16   cnt: (tq, L_K) f32 (sample counts)
    q = q_ref[0, 0]
    k = k_ref[0, 0]
    # MXU matmul, contracting E of both operands (no k.T materialization).
    s = lax.dot_general(q, k, (((1,), (1,)), ((), ())),
                        preferred_element_type=jnp.float32)      # (tq, L_K) f32
    cnt = cnt_ref[...]
    # Sum over the sampled keys (duplicates weighted by their multiplicity)
    # and max over the sampled keys; every query row has >=1 sample.
    samp_sum = jnp.sum(s * cnt, axis=1, keepdims=True)            # (tq, 1)
    samp_max = jnp.max(jnp.where(cnt > 0.0, s, -jnp.inf),
                       axis=1, keepdims=True)                     # (tq, 1)
    m_ref[0, 0] = samp_max - samp_sum * inv_lk


def _sampled_sparsity_measure(q, k, cnt):
    """q, k: (B,H,L,E) bf16; cnt: (L_Q, L_K) f32 -> M (B,H,L_Q) f32."""
    B, H, L_Q, E = q.shape
    L_K = k.shape[2]
    tq = _pick_tile(L_Q, 256)
    nq = L_Q // tq
    m = pl.pallas_call(
        functools.partial(_prob_measure_kernel, inv_lk=1.0 / L_K),
        out_shape=jax.ShapeDtypeStruct((B, H, L_Q, 1), jnp.float32),
        # q-tile outermost so the shared cnt tile stays VMEM-resident across
        # the (b, h) inner iterations (it is only re-fetched nq times total).
        grid=(nq, B, H),
        in_specs=[
            pl.BlockSpec((1, 1, tq, E), lambda qi, b, h: (b, h, qi, 0)),
            pl.BlockSpec((1, 1, L_K, E), lambda qi, b, h: (b, h, 0, 0)),
            pl.BlockSpec((tq, L_K), lambda qi, b, h: (qi, 0)),
        ],
        out_specs=pl.BlockSpec((1, 1, tq, 1), lambda qi, b, h: (b, h, qi, 0)),
        compiler_params=pltpu.CompilerParams(
            dimension_semantics=("parallel", "parallel", "parallel"),
            vmem_limit_bytes=64 * 1024 * 1024),
    )(q, k, cnt)
    return m[..., 0]


# --------- kernel 2: initial context + sparse attention + in-kernel scatter ---
def _sparse_ctx_kernel(mtop_sm, mtop_ref, qred_ref, k_ref, v_ref, ctx_ref, *,
                       scale, mask_flag, u_real, head_dim, tb):
    b = pl.program_id(0)
    L_Q, HD = ctx_ref.shape[1], ctx_ref.shape[2]
    L_K = k_ref.shape[2]
    u_pad = qred_ref.shape[2]
    D = head_dim
    H = HD // D

    # ---------------- initial context (lane-dense over H*D) ----------------
    if mask_flag:
        # cumsum(V, axis=-2) as blocked prefix sums: per tb-row chunk a small
        # (tb x tb) lower-triangular bf16 matmul + a running f32 carry.
        nchunks = L_Q // tb
        rows = lax.broadcasted_iota(jnp.int32, (tb, tb), 0)
        cols = lax.broadcasted_iota(jnp.int32, (tb, tb), 1)
        tri = (cols <= rows).astype(jnp.bfloat16)

        def chunk_body(c, carry):
            vch = v_ref[0, pl.ds(c * tb, tb), :]                    # (tb, HD) bf16
            loc = jnp.dot(tri, vch, preferred_element_type=jnp.float32)
            ctx_ref[0, pl.ds(c * tb, tb), :] = (loc + carry).astype(ctx_ref.dtype)
            return carry + jnp.sum(vch.astype(jnp.float32), axis=0, keepdims=True)

        lax.fori_loop(0, nchunks, chunk_body, jnp.zeros((1, HD), jnp.float32))
    else:
        v_all = v_ref[0].astype(jnp.float32)                        # (L_V, HD)
        vmean = jnp.mean(v_all, axis=0, keepdims=True)
        ctx_ref[0] = jnp.broadcast_to(vmean, (L_Q, HD)).astype(ctx_ref.dtype)

    # -------- sparse attention on the u selected queries of every head ------
    kpos = lax.broadcasted_iota(jnp.int32, (u_pad, L_K), 1)
    for h in range(H):                                  # static unroll
        q_h = qred_ref[0, h]                            # (u_pad, E) bf16
        k_h = k_ref[0, h]                               # (L_K, E) bf16
        s = lax.dot_general(q_h, k_h, (((1,), (1,)), ((), ())),
                            preferred_element_type=jnp.float32) * scale
        if mask_flag:
            qpos = mtop_ref[0, h]                       # (u_pad, 1) int32
            s = jnp.where(kpos > qpos, -jnp.inf, s)     # ProbMask (causal)
        m = jnp.max(s, axis=-1, keepdims=True)
        e = jnp.exp(s - m)
        p = e * pl.reciprocal(jnp.sum(e, axis=-1, keepdims=True), approx=True)
        v_h = v_ref[0, :, h * D:(h + 1) * D]            # (L_V, D) bf16
        o_h = jnp.dot(p.astype(jnp.bfloat16), v_h,
                      preferred_element_type=jnp.float32)  # (u_pad, D) f32
        # in-kernel scatter of the u_real updated rows into the context block
        for r in range(u_real):                          # static unroll
            row = mtop_sm[b, h * u_pad + r]              # SMEM scalar index
            ctx_ref[0, pl.ds(row, 1), h * D:(h + 1) * D] = (
                o_h[r:r + 1, :].astype(ctx_ref.dtype))


def _context_update(mtop_pad, q_red, k, v_flat, *, L_Q, scale, mask_flag,
                    u_real, head_dim):
    B, H, u_pad, E = q_red.shape
    L_K = k.shape[2]
    L_V, HD = v_flat.shape[1], v_flat.shape[2]
    tb = _pick_tile(L_Q, 128)
    kernel = functools.partial(_sparse_ctx_kernel, scale=scale,
                               mask_flag=mask_flag, u_real=u_real,
                               head_dim=head_dim, tb=tb)
    return pl.pallas_call(
        kernel,
        out_shape=jax.ShapeDtypeStruct((B, L_Q, HD), jnp.float32),
        grid_spec=pltpu.PrefetchScalarGridSpec(
            num_scalar_prefetch=1,                       # M_top -> SMEM
            grid=(B,),
            in_specs=[
                pl.BlockSpec((1, H, u_pad, 1), lambda b, sp: (b, 0, 0, 0)),
                pl.BlockSpec((1, H, u_pad, E), lambda b, sp: (b, 0, 0, 0)),
                pl.BlockSpec((1, H, L_K, E), lambda b, sp: (b, 0, 0, 0)),
                pl.BlockSpec((1, L_V, HD), lambda b, sp: (b, 0, 0)),
            ],
            out_specs=pl.BlockSpec((1, L_Q, HD), lambda b, sp: (b, 0, 0)),
        ),
        compiler_params=pltpu.CompilerParams(
            dimension_semantics=("parallel",),
            vmem_limit_bytes=64 * 1024 * 1024),
    )(mtop_pad.reshape(B, H * u_pad),        # scalar prefetch (SMEM) for scatter
      mtop_pad[..., None],                   # same indices in VMEM for the mask
      q_red, k, v_flat)


# ----------------------------------- forward ----------------------------------
def prob_attention(queries, keys, values, attn_mask=None, *,
                   mask_flag=True, factor=5, scale=None,
                   output_attention=False, rng_key=None):
    """Mirror of ProbAttention.forward.

    queries/keys/values: (B, L, H, D) float32 (PyTorch layout).
    Returns (context (B, H, L_Q, D) float32, attn or None).
    """
    B, L_Q, H, D = queries.shape
    _, L_K, _, _ = keys.shape
    L_V = values.shape[1]
    E = D

    # bf16 MXU inputs; all accumulation / softmax / measure math stays f32.
    q_bh = jnp.transpose(queries, (0, 2, 1, 3)).astype(jnp.bfloat16)   # (B,H,L_Q,E)
    k_bh = jnp.transpose(keys, (0, 2, 1, 3)).astype(jnp.bfloat16)      # (B,H,L_K,E)
    # V stays in (B, L, H*D): free reshape, lane-dense for the context kernel.
    v_flat = values.reshape(B, L_V, H * D).astype(jnp.bfloat16)

    U_part = int(factor * np.ceil(np.log(L_K)))
    u = int(factor * np.ceil(np.log(L_Q)))
    U_part = U_part if U_part < L_K else L_K
    u = u if u < L_Q else L_Q

    if rng_key is None:
        rng_key = jax.random.PRNGKey(0)
    # torch.randint(L_K, (L_Q, sample_k)): shared across (b, h) by design.
    index_sample = jax.random.randint(rng_key, (L_Q, U_part), 0, L_K)
    # Multiplicity of each sampled key per query (sampling with replacement).
    cnt = jnp.zeros((L_Q, L_K), jnp.float32).at[
        jnp.arange(L_Q)[:, None], index_sample].add(1.0)

    # ----- _prob_QK: sparsity measure + top-u query selection -----
    M = _sampled_sparsity_measure(q_bh, k_bh, cnt)          # (B,H,L_Q) f32
    _, M_top = lax.top_k(M, u)                              # (B,H,u) int32

    b_idx = jnp.arange(B)[:, None, None]
    h_idx = jnp.arange(H)[None, :, None]
    q_red = q_bh[b_idx, h_idx, M_top]                       # (B,H,u,E) bf16 (tiny)

    # Pad u up to a multiple of 8 (sublane alignment); pad rows never scattered.
    u_pad = ((u + 7) // 8) * 8
    if u_pad != u:
        q_red = jnp.pad(q_red, ((0, 0), (0, 0), (0, u_pad - u), (0, 0)))
        M_top_pad = jnp.pad(M_top, ((0, 0), (0, 0), (0, u_pad - u)))
    else:
        M_top_pad = M_top
    M_top_pad = M_top_pad.astype(jnp.int32)

    sc = scale if scale is not None else 1.0 / math.sqrt(D)
    if mask_flag:
        assert L_Q == L_V, "mask_flag=True requires L_Q == L_V"

    # ----- fused initial context + masked softmax attention + row scatter -----
    ctx_flat = _context_update(M_top_pad, q_red, k_bh, v_flat, L_Q=L_Q,
                               scale=sc, mask_flag=mask_flag, u_real=u,
                               head_dim=D)                  # (B, L_Q, H*D) f32
    context = jnp.transpose(ctx_flat.reshape(B, L_Q, H, D), (0, 2, 1, 3))

    attn = None
    if output_attention:
        # Cold path (off by default): recompute only the u x L_K rows in JAX.
        s_top = jnp.einsum('bhue,bhke->bhuk',
                           q_red[:, :, :u].astype(jnp.float32),
                           k_bh.astype(jnp.float32)) * sc
        if mask_flag:
            kpos = jnp.arange(L_K)[None, None, None, :]
            s_top = jnp.where(kpos > M_top[..., None], -jnp.inf, s_top)
        a = jax.nn.softmax(s_top, axis=-1)
        attn = jnp.full((B, H, L_V, L_V), 1.0 / L_V, dtype=a.dtype)
        attn = attn.at[b_idx, h_idx, M_top].set(a)

    # nn.Dropout(attention_dropout) in __init__ is never applied in forward.
    return context, attn


if __name__ == "__main__":
    key = jax.random.PRNGKey(0)
    kq, kk, kv, ks = jax.random.split(key, 4)
    B, L, H, D = 2, 16, 4, 32
    queries = jax.random.normal(kq, (B, L, H, D), dtype=jnp.float32)
    keys = jax.random.normal(kk, (B, L, H, D), dtype=jnp.float32)
    values = jax.random.normal(kv, (B, L, H, D), dtype=jnp.float32)

    context, attn = prob_attention(queries, keys, values, None,
                                   mask_flag=True, factor=5, scale=None,
                                   output_attention=False, rng_key=ks)
    context = jax.block_until_ready(context)
    assert context.shape == (B, H, L, D)
    assert bool(jnp.all(jnp.isfinite(context)))
    print("KERNEL_OK")
</pallas_src>

<mosaic_0001>
module attributes {stable_mosaic.version = 11 : i64} {
  func.func @_prob_measure_kernel(%arg0: i32, %arg1: i32, %arg2: i32, %arg3: memref<1x1x16x32xbf16, #tpu.memory_space<vmem>>, %arg4: memref<1x1x16x32xbf16, #tpu.memory_space<vmem>>, %arg5: memref<16x16xf32, #tpu.memory_space<vmem>>, %arg6: memref<1x1x16x1xf32, #tpu.memory_space<vmem>>) attributes {dimension_semantics = [#tpu.dimension_semantics<parallel>, #tpu.dimension_semantics<parallel>, #tpu.dimension_semantics<parallel>], iteration_bounds = array<i64: 1, 2, 4>, scalar_prefetch = 0 : i64, scratch_operands = 0 : i64, tpu.core_type = #tpu.core_type<tc>, window_params = [{transform_indices = @transform_0, window_bounds = array<i64: 1, 1, 16, 32>}, {transform_indices = @transform_1, window_bounds = array<i64: 1, 1, 16, 32>}, {transform_indices = @transform_2, window_bounds = array<i64: 16, 16>}, {transform_indices = @transform_3, window_bounds = array<i64: 1, 1, 16, 1>}]} {
    %c0 = arith.constant 0 : index
    %c0_0 = arith.constant 0 : index
    %c0_1 = arith.constant 0 : index
    %c0_2 = arith.constant 0 : index
    %0 = vector.load %arg3[%c0, %c0_0, %c0_1, %c0_2] : memref<1x1x16x32xbf16, #tpu.memory_space<vmem>>, vector<1x1x16x32xbf16>
    %1 = vector.shape_cast %0 : vector<1x1x16x32xbf16> to vector<16x32xbf16>
    %c0_3 = arith.constant 0 : index
    %c0_4 = arith.constant 0 : index
    %c0_5 = arith.constant 0 : index
    %c0_6 = arith.constant 0 : index
    %2 = vector.load %arg4[%c0_3, %c0_4, %c0_5, %c0_6] : memref<1x1x16x32xbf16, #tpu.memory_space<vmem>>, vector<1x1x16x32xbf16>
    %3 = vector.shape_cast %2 : vector<1x1x16x32xbf16> to vector<16x32xbf16>
    %cst = arith.constant dense<0.000000e+00> : vector<16x16xf32>
    %4 = tpu.matmul %1, %3, %cst {dimension_numbers = #tpu.dot_dimension_numbers<[1], [1], [0], [0], [0, 0, 1, 0], [], []>} : vector<16x32xbf16>, vector<16x32xbf16>, vector<16x16xf32> -> vector<16x16xf32>
    %c0_7 = arith.constant 0 : index
    %c0_8 = arith.constant 0 : index
    %5 = vector.load %arg5[%c0_7, %c0_8] : memref<16x16xf32, #tpu.memory_space<vmem>>, vector<16x16xf32>
    %6 = arith.mulf %4, %5 : vector<16x16xf32>
    %cst_9 = arith.constant dense<0.000000e+00> : vector<16xf32>
    %7 = vector.multi_reduction <add>, %6, %cst_9 [1] : vector<16x16xf32> to vector<16xf32>
    %8 = vector.shape_cast %7 : vector<16xf32> to vector<16x1xf32>
    %cst_10 = arith.constant 0.000000e+00 : f32
    %9 = vector.broadcast %cst_10 : f32 to vector<16x16xf32>
    %10 = arith.cmpf ogt, %5, %9 : vector<16x16xf32>
    %cst_11 = arith.constant 0xFF800000 : f32
    %11 = vector.broadcast %cst_11 : f32 to vector<16x16xf32>
    %12 = arith.select %10, %4, %11 : vector<16x16xi1>, vector<16x16xf32>
    %cst_12 = arith.constant dense<0xFF800000> : vector<16xf32>
    %13 = vector.multi_reduction <maximumf>, %12, %cst_12 [1] : vector<16x16xf32> to vector<16xf32>
    %14 = vector.shape_cast %13 : vector<16xf32> to vector<16x1xf32>
    %cst_13 = arith.constant 6.250000e-02 : f32
    %15 = vector.broadcast %cst_13 : f32 to vector<16x1xf32>
    %16 = arith.mulf %8, %15 : vector<16x1xf32>
    %17 = arith.subf %14, %16 : vector<16x1xf32>
    %c0_14 = arith.constant 0 : index
    %c0_15 = arith.constant 0 : index
    %c0_16 = arith.constant 0 : index
    %c0_17 = arith.constant 0 : index
    %18 = vector.load %arg6[%c0_14, %c0_15, %c0_16, %c0_17] : memref<1x1x16x1xf32, #tpu.memory_space<vmem>>, vector<1x1x16x1xf32>
    %19 = vector.shape_cast %18 : vector<1x1x16x1xf32> to vector<16x1xf32>
    %20 = vector.shape_cast %17 : vector<16x1xf32> to vector<1x1x16x1xf32>
    tpu.vector_store %arg6[%c0_14, %c0_15, %c0_16, %c0_17], %20 {strides = array<i32>} : memref<1x1x16x1xf32, #tpu.memory_space<vmem>>, vector<1x1x16x1xf32>,
    return
  }
  func.func @transform_0(%arg0: i32, %arg1: i32, %arg2: i32) -> (i32, i32, i32, i32) {
    %c0_i32 = arith.constant 0 : i32
    %c0_i32_0 = arith.constant 0 : i32
    return %arg1, %arg2, %arg0, %c0_i32 : i32, i32, i32, i32
  }
  func.func @transform_1(%arg0: i32, %arg1: i32, %arg2: i32) -> (i32, i32, i32, i32) {
    %c0_i32 = arith.constant 0 : i32
    %c0_i32_0 = arith.constant 0 : i32
    %c0_i32_1 = arith.constant 0 : i32
    return %arg1, %arg2, %c0_i32, %c0_i32_0 : i32, i32, i32, i32
  }
  func.func @transform_2(%arg0: i32, %arg1: i32, %arg2: i32) -> (i32, i32) {
    %c0_i32 = arith.constant 0 : i32
    %c0_i32_0 = arith.constant 0 : i32
    return %arg0, %c0_i32 : i32, i32
  }
  func.func @transform_3(%arg0: i32, %arg1: i32, %arg2: i32) -> (i32, i32, i32, i32) {
    %c0_i32 = arith.constant 0 : i32
    %c0_i32_0 = arith.constant 0 : i32
    return %arg1, %arg2, %arg0, %c0_i32 : i32, i32, i32, i32
  }
}

</mosaic_0001>

<llo_original>
// kernel: tpu_custom_call.1
$region0: #{tpu_custom_call.1}
  #allocation0 [shape = 'u32[]', space=smem, size = 0x4, offset = 0x4, fixed_abs, tag = 'smem constant byte address 0x4 - core index']
  #allocation1 [shape = 'u32[144,128]{1,0:T(1,128)}', space=vmem, size = 0x12000, scoped, tag = 'internal scratch']
  %s0 = inlined_call_operand.hbm [shape: bf16[2,4,16,32], index: 0, kind: input, shape index: {}]
  %s1 = inlined_call_operand.hbm [shape: bf16[2,4,16,32], index: 1, kind: input, shape index: {}]
  %s2 = inlined_call_operand.hbm [shape: f32[16,16], index: 2, kind: input, shape index: {}]
  %s3 = inlined_call_operand.hbm [shape: f32[2,4,16,1], index: 3, kind: output, shape index: {}]
  %s4 = sld [smem:[#allocation0]]
  $region57: #{tpu_custom_call.1} parent=0
    _
  %s6 = ssub.s32 1, %s4
  %s7 = scalar_select 0, %s6, %s4
  $region1: #{tpu_custom_call.1} parent=0
    #allocation2 [shape = 'u8[8192]{0}', space=vmem, size = 0x2000, scoped, tag = 'input window, operand 0']
    #allocation3 [shape = 's32[2]{0}', space=sflag, size = 0x8, scoped, tag = 'scoped memory for tpu_custom_call.1']
    #allocation4 [shape = 's32[2]{0}', space=sflag, size = 0x8, scoped, tag = 'scoped memory for tpu_custom_call.1']
    #allocation5 [shape = 'u8[8192]{0}', space=vmem, size = 0x2000, scoped, tag = 'input window, operand 1']
    #allocation6 [shape = 's32[2]{0}', space=sflag, size = 0x8, scoped, tag = 'scoped memory for tpu_custom_call.1']
    #allocation7 [shape = 'u8[8192]{0}', space=vmem, size = 0x2000, scoped, tag = 'input window, operand 2, single buffered']
    #allocation8 [shape = 'u8[16384]{0}', space=vmem, size = 0x4000, scoped, tag = 'output window, operand 0']
    %8 = vsyncpa [#allocation3], 0
    %s9 = scalar_lea.sflag [#allocation3], 1
    %10 = vsyncpa %s9, 0
    %11 = vsyncpa [#allocation6], 0
    %s12 = scalar_lea.sflag [#allocation6], 1
    %13 = vsyncpa %s12, 0
    %14 = vsyncpa [#allocation4], 0
    %s15 = scalar_lea.sflag [#allocation4], 1
    %16 = vsyncpa %s15, 0
    loop: start=0, step=1, limit=10
    $region2: #{tpu_custom_call.1} parent=1 // loop_pre_header
      _
    $region3: #{tpu_custom_call.1} parent=1 // loop_header
      %s18 = sphi 0, %s22
      %p19 = scmp.ge.s32.totalorder %s18, 10
      %s25 = sphi 0, %s44
      %s26 = sphi 0, %s40
      %s27 = sphi 0, %s36
      %s28 = sphi 0, %s25
      %s29 = sphi 0, %s26
      %s30 = sphi 0, %s27
      %s31 = sphi 0, %s28
      %s32 = sphi 0, %s29
      %s33 = sphi 0, %s30
      %s51 = sphi 0, %s53
      %s54 = sphi 0, %s51
      %s55 = sphi 0, %s54
      %s71 = sphi 0, %s55
      %s79 = sphi 0, %s81
      %s82 = sphi 0, %s79
      %s83 = sphi 0, %s82
      %s99 = sphi 0, %s83
      %s105 = sphi 0, %s107
      %s108 = sphi 0, %s105
      %s109 = sphi 0, %s108
      %s125 = sphi 0, %s109
      %s135 = sphi 0, %s137
      %s138 = sphi 0, %s135
      %s139 = sphi 0, %s138
      %s155 = sphi 0, %s139
    $region4: #{tpu_custom_call.1} parent=1 // loop_header_branch
      %21 = sbr.rel (%p19) target = $region8
    $region5: #{tpu_custom_call.1} parent=1 // loop_body
      %s23 = ssub.s32 %s18, 1
      %s24 = ssub.s32 %s18, 2
      %s34 = sadd.s32 1, %s27
      %p35 = scmp.ge.s32.totalorder %s34, 4
      %s36 = scalar_select %p35, 0, %s34
      %s37 = sadd.s32 1, %s26
      %s38 = scalar_select %p35, %s37, %s26
      %p39 = scmp.ge.s32.totalorder %s38, 2
      %s40 = scalar_select %p39, 0, %s38
      %s41 = sadd.s32 1, %s25
      %s42 = scalar_select %p39, %s41, %s25
      %p43 = scmp.ge.s32.totalorder %s42, 1
      %s44 = scalar_select %p43, 0, %s42
      %s45 = ssub.s32 %s26, %s40
      %s46 = ssub.s32 %s27, %s36
      %s47 = sor.u32 %s45, %s46
      %s48 = ssub.s32 %s25, %s44
      %s49 = sor.u32 %s47, %s48
      %p50 = scmp.eq.s32.totalorder %s49, 0
      %s52 = sadd.s32 %s51, 1
      %s53 = scalar_select %p50, %s51, %s52
      %p56 = pneg %p50
      %p57 = scmp.eq.s32.totalorder %s18, 7
      %p58 = por %p56, %p57
      %p59 = scmp.ne.s32.totalorder %s51, %s54
      %p60 = scmp.eq.s32.totalorder %s18, 0
      %p61 = por %p59, %p60
      %p62 = scmp.ne.s32.totalorder %s51, %s54
      %p63 = scmp.eq.s32.totalorder %s23, 7
      %p64 = por %p62, %p63
      %p65 = scmp.ne.s32.totalorder %s54, %s55
      %p66 = scmp.eq.s32.totalorder %s23, 0
      %p67 = por %p65, %p66
      %p68 = scmp.ne.s32.totalorder %s54, %s55
      %p69 = scmp.eq.s32.totalorder %s24, 7
      %p70 = por %p68, %p69
      %p72 = scmp.ne.s32.totalorder %s55, %s71
      %p73 = scmp.eq.s32.totalorder %s24, 0
      %p74 = por %p72, %p73
      %s75 = ssub.s32 %s26, %s40
      %s76 = ssub.s32 %s27, %s36
      %s77 = sor.u32 %s75, %s76
      %p78 = scmp.eq.s32.totalorder %s77, 0
      %s80 = sadd.s32 %s79, 1
      %s81 = scalar_select %p78, %s79, %s80
      %p84 = pneg %p78
      %p85 = scmp.eq.s32.totalorder %s18, 7
      %p86 = por %p84, %p85
      %p87 = scmp.ne.s32.totalorder %s79, %s82
      %p88 = scmp.eq.s32.totalorder %s18, 0
      %p89 = por %p87, %p88
      %p90 = scmp.ne.s32.totalorder %s79, %s82
      %p91 = scmp.eq.s32.totalorder %s23, 7
      %p92 = por %p90, %p91
      %p93 = scmp.ne.s32.totalorder %s82, %s83
      %p94 = scmp.eq.s32.totalorder %s23, 0
      %p95 = por %p93, %p94
      %p96 = scmp.ne.s32.totalorder %s82, %s83
      %p97 = scmp.eq.s32.totalorder %s24, 7
      %p98 = por %p96, %p97
      %p100 = scmp.ne.s32.totalorder %s83, %s99
      %p101 = scmp.eq.s32.totalorder %s24, 0
      %p102 = por %p100, %p101
      %s103 = ssub.s32 %s25, %s44
      %p104 = scmp.eq.s32.totalorder %s103, 0
      %s106 = sadd.s32 %s105, 1
      %s107 = scalar_select %p104, %s105, %s106
      %p110 = pneg %p104
      %p111 = scmp.eq.s32.totalorder %s18, 7
      %p112 = por %p110, %p111
      %p113 = scmp.ne.s32.totalorder %s105, %s108
      %p114 = scmp.eq.s32.totalorder %s18, 0
      %p115 = por %p113, %p114
      %p116 = scmp.ne.s32.totalorder %s105, %s108
      %p117 = scmp.eq.s32.totalorder %s23, 7
      %p118 = por %p116, %p117
      %p119 = scmp.ne.s32.totalorder %s108, %s109
      %p120 = scmp.eq.s32.totalorder %s23, 0
      %p121 = por %p119, %p120
      %p122 = scmp.ne.s32.totalorder %s108, %s109
      %p123 = scmp.eq.s32.totalorder %s24, 7
      %p124 = por %p122, %p123
      %p126 = scmp.ne.s32.totalorder %s109, %s125
      %p127 = scmp.eq.s32.totalorder %s24, 0
      %p128 = por %p126, %p127
      %s129 = ssub.s32 %s26, %s40
      %s130 = ssub.s32 %s27, %s36
      %s131 = sor.u32 %s129, %s130
      %s132 = ssub.s32 %s25, %s44
      %s133 = sor.u32 %s131, %s132
      %p134 = scmp.eq.s32.totalorder %s133, 0
      %s136 = sadd.s32 %s135, 1
      %s137 = scalar_select %p134, %s135, %s136
      %p140 = pneg %p134
      %p141 = scmp.eq.s32.totalorder %s18, 7
      %p142 = por %p140, %p141
      %p143 = scmp.ne.s32.totalorder %s135, %s138
      %p144 = scmp.eq.s32.totalorder %s18, 0
      %p145 = por %p143, %p144
      %p146 = scmp.ne.s32.totalorder %s135, %s138
      %p147 = scmp.eq.s32.totalorder %s23, 7
      %p148 = por %p146, %p147
      %p149 = scmp.ne.s32.totalorder %s138, %s139
      %p150 = scmp.eq.s32.totalorder %s23, 0
      %p151 = por %p149, %p150
      %p152 = scmp.ne.s32.totalorder %s138, %s139
      %p153 = scmp.eq.s32.totalorder %s24, 7
      %p154 = por %p152, %p153
      %p156 = scmp.ne.s32.totalorder %s139, %s155
      %p157 = scmp.eq.s32.totalorder %s24, 0
      %p158 = por %p156, %p157
      %p159 = scmp.le.s32.totalorder 1, %s18
      %p160 = scmp.lt.s32.totalorder %s18, 9
      %p161 = pnand %p159, %p160
      %p162 = pneg %p161
      // Predicated region
      $region9: #{tpu_custom_call.1} parent=5 // pred_check
        _
      $region10: #{tpu_custom_call.1} parent=5 // pred_check_branch
        %164 = sbr.rel (%p161) target = $region12
      $region11: #{tpu_custom_call.1} parent=5 // pred_region
        %s165 = ssub.s32 %s18, 1
        // Predicated region
        $region13: #{tpu_custom_call.1} parent=11 // pred_check
          %p166 = pneg %p121
        $region14: #{tpu_custom_call.1} parent=11 // pred_check_branch
          %168 = sbr.rel (%p166) target = $region16
        $region15: #{tpu_custom_call.1} parent=11 // pred_region
          %s169 = smul.u32 2, %s28
          %s171 = ssub.s32 256, 256
          %172 = vsyncadd [#allocation6], %s171
          %s173 = smul.addr %s169, 128
          %s174 = scalar_lea.hbm %s2, %s173
          %s175 = sshll.u32 [#allocation7], 4
          %s176 = int_to_ptr.vmem [resolvable:$true] %s175
          %181 = dma.hbm_to_vmem [thread:$0]  %s174, 256, %s176, [#allocation6], 128, 128, 8
        $region16: #{tpu_custom_call.1} parent=11 // pred_fallthru
          _
      $region12: #{tpu_custom_call.1} parent=5 // pred_fallthru
        _
      %p182 = scmp.lt.s32.totalorder %s18, 8
      // Predicated region
      $region17: #{tpu_custom_call.1} parent=5 // pred_check
        %p183 = pneg %p182
      $region18: #{tpu_custom_call.1} parent=5 // pred_check_branch
        %185 = sbr.rel (%p183) target = $region20
      $region19: #{tpu_custom_call.1} parent=5 // pred_region
        // Predicated region
        $region21: #{tpu_custom_call.1} parent=19 // pred_check
          %p186 = pneg %p61
        $region22: #{tpu_custom_call.1} parent=19 // pred_check_branch
          %188 = sbr.rel (%p186) target = $region24
        $region23: #{tpu_custom_call.1} parent=19 // pred_region
          %s189 = sand.u32 %s51, 1
          %s190 = scalar_lea.sflag [#allocation3], %s189
          %s191 = sand.u32 %s51, 1
          %s192 = smul.addr %s191, 8
          %s193 = scalar_lea.vmem [#allocation2], %s192
          %s194 = smul.u32 2, %s25
          %s196 = ssub.s32 128, 128
          %197 = vsyncadd %s190, %s196
          %s198 = smul.addr %s27, 2
          %s199 = sadd.s32 %s194, %s198
          %s200 = smul.addr %s26, 8
          %s201 = sadd.s32 %s199, %s200
          %s202 = smul.addr %s201, 64
          %s203 = scalar_lea.hbm %s0, %s202
          %s204 = sshll.u32 %s193, 4
          %s205 = int_to_ptr.vmem [resolvable:$true] %s204
          %210 = dma.hbm_to_vmem [thread:$0]  %s203, 128, %s205, %s190, 64, 64, 4
        $region24: #{tpu_custom_call.1} parent=19 // pred_fallthru
          _
        // Predicated region
        $region25: #{tpu_custom_call.1} parent=19 // pred_check
          %p211 = pneg %p89
        $region26: #{tpu_custom_call.1} parent=19 // pred_check_branch
          %213 = sbr.rel (%p211) target = $region28
        $region27: #{tpu_custom_call.1} parent=19 // pred_region
          %s214 = sand.u32 %s18, 1
          %s215 = scalar_lea.sflag [#allocation6], %s214
          %s216 = sand.u32 %s79, 1
          %s217 = smul.addr %s216, 8
          %s218 = scalar_lea.vmem [#allocation5], %s217
          %s220 = ssub.s32 128, 128
          %221 = vsyncadd %s215, %s220
          %s222 = smul.addr %s27, 2
          %s223 = smul.addr %s26, 8
          %s224 = sadd.s32 %s222, %s223
          %s225 = smul.addr %s224, 64
          %s226 = scalar_lea.hbm %s1, %s225
          %s227 = sshll.u32 %s218, 4
          %s228 = int_to_ptr.vmem [resolvable:$true] %s227
          %233 = dma.hbm_to_vmem [thread:$0]  %s226, 128, %s228, %s215, 64, 64, 4
        $region28: #{tpu_custom_call.1} parent=19 // pred_fallthru
          _
      $region20: #{tpu_custom_call.1} parent=5 // pred_fallthru
        _
      %p234 = scmp.le.s32.totalorder 1, %s18
      %p235 = scmp.lt.s32.totalorder %s18, 9
      %p236 = pnand %p234, %p235
      %p237 = pneg %p236
      // Predicated region
      $region29: #{tpu_custom_call.1} parent=5 // pred_check
        _
      $region30: #{tpu_custom_call.1} parent=5 // pred_check_branch
        %239 = sbr.rel (%p236) target = $region32
      $region31: #{tpu_custom_call.1} parent=5 // pred_region
        %s240 = ssub.s32 %s18, 1
        %s241 = sand.u32 %s54, 1
        %s242 = scalar_lea.sflag [#allocation3], %s241
        %s243 = sand.u32 %s54, 1
        %s244 = smul.addr %s243, 8
        %s245 = scalar_lea.vmem [#allocation2], %s244
        // Predicated region
        $region33: #{tpu_custom_call.1} parent=31 // pred_check
          %p246 = pneg %p67
        $region34: #{tpu_custom_call.1} parent=31 // pred_check_branch
          %248 = sbr.rel (%p246) target = $region36
        $region35: #{tpu_custom_call.1} parent=31 // pred_region
          %249 = dma.done %s242, 128
        $region36: #{tpu_custom_call.1} parent=31 // pred_fallthru
          _
        %s250 = sand.u32 %s23, 1
        %s251 = scalar_lea.sflag [#allocation6], %s250
        %s252 = sand.u32 %s82, 1
        %s253 = smul.addr %s252, 8
        %s254 = scalar_lea.vmem [#allocation5], %s253
        // Predicated region
        $region37: #{tpu_custom_call.1} parent=31 // pred_check
          %p255 = pneg %p95
        $region38: #{tpu_custom_call.1} parent=31 // pred_check_branch
          %257 = sbr.rel (%p255) target = $region40
        $region39: #{tpu_custom_call.1} parent=31 // pred_region
          %258 = dma.done %s251, 128
        $region40: #{tpu_custom_call.1} parent=31 // pred_fallthru
          _
        // Predicated region
        $region41: #{tpu_custom_call.1} parent=31 // pred_check
          %p259 = pneg %p121
        $region42: #{tpu_custom_call.1} parent=31 // pred_check_branch
          %261 = sbr.rel (%p259) target = $region44
        $region43: #{tpu_custom_call.1} parent=31 // pred_region
          %262 = dma.done [#allocation6], 256
        $region44: #{tpu_custom_call.1} parent=31 // pred_fallthru
          _
        %s263 = sand.u32 %s54, 1
        %s264 = scalar_lea.sflag [#allocation3], %s263
        %s265 = sand.u32 %s54, 1
        %s266 = smul.addr %s265, 8
        %s267 = scalar_lea.vmem [#allocation2], %s266
        %p268 = pneg %p67
        %p269 = pneg %p64
        %s270 = sand.u32 %s23, 1
        %s271 = scalar_lea.sflag [#allocation6], %s270
        %s272 = sand.u32 %s82, 1
        %s273 = smul.addr %s272, 8
        %s274 = scalar_lea.vmem [#allocation5], %s273
        %p275 = pneg %p95
        %p276 = pneg %p92
        %p277 = pneg %p121
        %p278 = pneg %p118
        %p279 = pneg %p151
        %p280 = pneg %p148
        %s281 = sand.u32 %s138, 1
        %s282 = scalar_lea.sflag [#allocation4], %s281
        %s283 = sand.u32 %s138, 1
        %s284 = smul.addr %s283, 16
        %s285 = scalar_lea.vmem [#allocation8], %s284
        %s286 = smul.u32 2, %s28
        %s287 = smul.u32 2, %s28
        %s288 = smul.u32 2, %s28
        %v290 = vld [vmem:[%s245] sm:$0xf]
        %v291 = vld [vmem:[%s245 + $0x4] sm:$0xf]
        %v292 = vld [vmem:[%s254] sm:$0xf]
        %v293 = vld [vmem:[%s254 + $0x4] sm:$0xf]
        %v296 = vunpack.c.l.b16 %v290
        %v297 = vunpack.c.l.b16 %v291
        %v298 = vpack.c.b16 %v297, %v296
        %v301 = vunpack.c.l.b16 %v292
        %v302 = vunpack.c.l.b16 %v293
        %v303 = vpack.c.b16 %v302, %v301
        %vm304 = vcmask 261120
        %v306 = vsel %vm304, %v298, 0
        %v309 = vsel %vm304, %v303, 0
        %311 = vmatprep.subr.bf16.mxu0 0
        %312 = vmatpush1.bf16.xpose.msra.mxu0 %v309
        %313 = vmatprep.subr.bf16.mxu0 0
        %314 = vmatpush1.bf16.xpose.msra.mxu0 0
        %315 = vmatprep.subr.bf16.mxu0 0
        %316 = vmatpush1.bf16.xpose.msra.mxu0 0
        %317 = vmatprep.subr.bf16.mxu0 0
        %318 = vmatpush1.bf16.xpose.msra.mxu0 0
        %319 = vmatprep.subr.bf16.mxu0 0
        %320 = vmatpush1.bf16.xpose.msra.mxu0 0
        %321 = vmatprep.subr.bf16.mxu0 0
        %322 = vmatpush1.bf16.xpose.msra.mxu0 0
        %323 = vmatprep.subr.bf16.mxu0 0
        %324 = vmatpush1.bf16.xpose.msra.mxu0 0
        %325 = vmatprep.subr.bf16.mxu0 0
        %326 = vmatpush1.bf16.xpose.msra.mxu0 0
        %327 = vmatprep.subr.bf16.mxu0 0
        %328 = vmatpush1.bf16.xpose.msra.mxu0 0
        %329 = vmatprep.subr.bf16.mxu0 0
        %330 = vmatpush1.bf16.xpose.msra.mxu0 0
        %331 = vmatprep.subr.bf16.mxu0 0
        %332 = vmatpush1.bf16.xpose.msra.mxu0 0
        %333 = vmatprep.subr.bf16.mxu0 0
        %334 = vmatpush1.bf16.xpose.msra.mxu0 0
        %335 = vmatprep.subr.bf16.mxu0 0
        %336 = vmatpush1.bf16.xpose.msra.mxu0 0
        %337 = vmatprep.subr.bf16.mxu0 0
        %338 = vmatpush1.bf16.xpose.msra.mxu0 0
        %339 = vmatprep.subr.bf16.mxu0 0
        %340 = vmatpush1.bf16.xpose.msra.mxu0 0
        %341 = vmatprep.subr.bf16.mxu0 0
        %342 = vmatpush1.bf16.xpose.msra.mxu0 0
        %343 = vmatprep.mubr.bf16.mxu0 0
        %344 = vmatmul.mubr.bf16.gmra.mrb[0].mxu0 %v306
        %v345 = vpop.f32.mrb[0].mxu0
        %v346 = vadd.f32 0.0, %v345
        %v347 = vpop.f32.mrb[0].mxu0
        %v348 = vpop.f32.mrb[0].mxu0
        %v349 = vadd.f32 0.0, %v348
        %v350 = vpop.f32.mrb[0].mxu0
        %351 = vdwg.mxu0
        %v352 = vld [vmem:[#allocation7] sm:$0xff]
        %v353 = vld [vmem:[#allocation7 + $0x8] sm:$0xff]
        %v354 = vmul.f32 %v346, %v352
        %v355 = vmul.f32 %v349, %v353
        %vm356 = vcmask 130048
        %v357 = vsel %vm356, %v354, 0.0
        %358 = vadd.xlane.f32.xlu0 %v357
        %v359 = vpop.xlane.xlu0 %358
        %v360 = vsel %vm356, %v355, 0.0
        %361 = vadd.xlane.f32.xlu0 %v360
        %v362 = vpop.xlane.xlu0 %361
        %vm363 = vcmp.gt.f32.partialorder %v352, 0.0
        %vm364 = vcmp.gt.f32.partialorder %v353, 0.0
        %v365 = vsel %vm363, %v346, -inf
        %v366 = vsel %vm364, %v349, -inf
        %v367 = vsel %vm356, %v365, -inf
        %368 = vmax.xlane.f32.xlu0 %v367
        %v369 = vpop.xlane.xlu0 %368
        %v370 = vsel %vm356, %v366, -inf
        %371 = vmax.xlane.f32.xlu0 %v370
        %v372 = vpop.xlane.xlu0 %371
        %v373 = vmul.f32 %v359, 0.0625
        %v374 = vmul.f32 %v362, 0.0625
        %v375 = vsub.f32 %v369, %v373
        %v376 = vsub.f32 %v372, %v374
        %vm377 = vcmask 7168
        %378 = vst.msk [vmem:[%s285] sm:$0xff] %vm377, %v375
        %379 = vst.msk [vmem:[%s285 + $0x8] sm:$0xff] %vm377, %v376
        %s380 = sand.u32 %s138, 1
        %s381 = scalar_lea.sflag [#allocation4], %s380
        %s382 = sand.u32 %s138, 1
        %s383 = smul.addr %s382, 16
        %s384 = scalar_lea.vmem [#allocation8], %s383
        // Predicated region
        $region45: #{tpu_custom_call.1} parent=31 // pred_check
          %p385 = pneg %p148
        $region46: #{tpu_custom_call.1} parent=31 // pred_check_branch
          %387 = sbr.rel (%p385) target = $region48
        $region47: #{tpu_custom_call.1} parent=31 // pred_region
          %s388 = smul.u32 2, %s28
          %s390 = ssub.s32 256, 256
          %391 = vsyncadd %s381, %s390
          %s392 = smul.addr %s30, 2
          %s393 = sadd.s32 %s388, %s392
          %s394 = smul.addr %s29, 8
          %s395 = sadd.s32 %s393, %s394
          %s396 = smul.addr %s395, 128
          %s397 = scalar_lea.hbm %s3, %s396
          %s398 = sshll.u32 %s384, 4
          %s399 = int_to_ptr.vmem [resolvable:$true] %s398
          %404 = dma.vmem_to_hbm [thread:$0]  %s399, 256, %s397, %s381, 128, 128, 8
        $region48: #{tpu_custom_call.1} parent=31 // pred_fallthru
          _
      $region32: #{tpu_custom_call.1} parent=5 // pred_fallthru
        _
      %p405 = scmp.le.s32.totalorder 2, %s18
      // Predicated region
      $region49: #{tpu_custom_call.1} parent=5 // pred_check
        %p406 = pneg %p405
      $region50: #{tpu_custom_call.1} parent=5 // pred_check_branch
        %408 = sbr.rel (%p406) target = $region52
      $region51: #{tpu_custom_call.1} parent=5 // pred_region
        %s409 = ssub.s32 %s18, 2
        // Predicated region
        $region53: #{tpu_custom_call.1} parent=51 // pred_check
          %p410 = pneg %p154
        $region54: #{tpu_custom_call.1} parent=51 // pred_check_branch
          %412 = sbr.rel (%p410) target = $region56
        $region55: #{tpu_custom_call.1} parent=51 // pred_region
          %s413 = sand.u32 %s139, 1
          %s414 = scalar_lea.sflag [#allocation4], %s413
          %s415 = sand.u32 %s139, 1
          %s416 = smul.addr %s415, 16
          %s417 = scalar_lea.vmem [#allocation8], %s416
          %418 = dma.done %s414, 256
        $region56: #{tpu_custom_call.1} parent=51 // pred_fallthru
          _
      $region52: #{tpu_custom_call.1} parent=5 // pred_fallthru
        _
    $region6: #{tpu_custom_call.1} parent=1 // loop_footer
      %s22 = sadd.s32 1, %s18
    $region7: #{tpu_custom_call.1} parent=1 // loop_footer_branch
      %17 = sbr.rel target = $region3
    $region8: #{tpu_custom_call.1} parent=1 // loop_exit
      _
    %419 = vsyncpa [#allocation3], 1
    %s420 = scalar_lea.sflag [#allocation3], 1
    %421 = vsyncpa %s420, 1
    %422 = vsyncpa [#allocation6], 1
    %s423 = scalar_lea.sflag [#allocation6], 1
    %424 = vsyncpa %s423, 1
    %425 = vsyncpa [#allocation4], 1
    %s426 = scalar_lea.sflag [#allocation4], 1
    %427 = vsyncpa %s426, 1

</llo_original>
